<compile_context>
chip_gen: v7x
topology: tpu7x:2x2x1
jax: 0.10.0
libtpu: 0.0.40
codegen_flags: <defaults>
</compile_context>

<pallas_src>
import jax
import jax.numpy as jnp
from jax.experimental import pallas as pl
from jax.experimental.pallas import tpu as pltpu

_LANE = 128
_TARGET_TILE_BYTES = 1 << 20  # ~1 MiB per f32 data tile (pred / ref / out)


def _dc_kernel(w_ref, pred_ref, ref_ref, mask_ref, out_ref):
    # w_ref:    (1, 1) scalar in SMEM.
    # pred/ref/out: (block_rows, block_cols) f32 tiles in VMEM.
    # mask_ref: (1, block_cols) tile, broadcast over the row (sublane) axis.
    w = w_ref[0, 0]
    diff = pred_ref[...] - ref_ref[...]
    masked = jnp.where(mask_ref[...] != 0, diff, jnp.zeros_like(diff))
    out_ref[...] = masked * w


def _pick_tiles(rows, cols):
    """Choose (block_rows, block_cols) obeying the (8,128) rule with ~1 MiB tiles."""
    # Rows: full extent when modest (legal block shape), else a multiple-of-8 cap.
    block_rows = rows if rows <= 1024 else 1024
    # Columns: lane-dense (multiple of 128) tile sized so one f32 data tile is
    # ~1 MiB, or the full extent when the array is already small / narrow.
    budget = max(_LANE, (_TARGET_TILE_BYTES // (block_rows * 4)) // _LANE * _LANE)
    if cols <= budget or cols < _LANE:
        block_cols = cols  # full extent is always a legal block shape
    else:
        block_cols = budget  # multiple of 128; ragged edge handled by cdiv grid
    return block_rows, block_cols


def data_consistency_layer(pred_kspace, ref_kspace, mask, dc_weight):
    """Pallas implementation of DataConsistencyLayer.forward.

    pred_kspace, ref_kspace: [B, C, H, W, 2] float32
    mask:                    [1, 1, H, W, 1] (broadcastable over B, C, and re/im)
    dc_weight:               scalar parameter (shape (1,))
    """
    assert pred_kspace.shape == ref_kspace.shape
    B, C, H, W, two = pred_kspace.shape

    rows = B * C
    cols = H * W * two

    # Lane-dense flattening (contiguous reshape, free).
    pred2d = pred_kspace.reshape(rows, cols)
    ref2d = ref_kspace.reshape(rows, cols)

    # Keep the mask small: broadcast only over spatial / real-imag dims and
    # reuse the single (1, H*W*2) slab across the batch*coil grid axis.
    mask2d = jnp.broadcast_to(mask, (1, 1, H, W, two)).astype(jnp.float32)
    mask2d = mask2d.reshape(1, cols)

    w2d = jnp.reshape(dc_weight.astype(jnp.float32), (1, 1))

    block_rows, block_cols = _pick_tiles(rows, cols)
    grid = (pl.cdiv(rows, block_rows), pl.cdiv(cols, block_cols))

    data_spec = pl.BlockSpec((block_rows, block_cols), lambda i, j: (i, j))
    mask_spec = pl.BlockSpec((1, block_cols), lambda i, j: (0, j))

    n = rows * cols
    cost = pl.CostEstimate(
        flops=3 * n,                      # sub + select + scale per element
        transcendentals=0,
        bytes_accessed=(3 * n + cols) * 4,  # pred + ref + out + small mask
    )

    out2d = pl.pallas_call(
        _dc_kernel,
        out_shape=jax.ShapeDtypeStruct((rows, cols), pred_kspace.dtype),
        grid=grid,
        in_specs=[
            pl.BlockSpec(memory_space=pltpu.SMEM),  # dc_weight scalar
            data_spec,                              # pred
            data_spec,                              # ref
            mask_spec,                              # mask (reused across rows)
        ],
        out_specs=data_spec,
        compiler_params=pltpu.CompilerParams(
            dimension_semantics=("parallel", "parallel"),
        ),
        cost_estimate=cost,
    )(w2d, pred2d, ref2d, mask2d)

    return out2d.reshape(pred_kspace.shape)


def _reference(pred_kspace, ref_kspace, mask, dc_weight):
    zero = jnp.zeros((1, 1, 1, 1, 1), pred_kspace.dtype)
    return jnp.where(mask.astype(bool), pred_kspace - ref_kspace, zero) * dc_weight


if __name__ == "__main__":
    key = jax.random.PRNGKey(0)
    k1, k2, k3 = jax.random.split(key, 3)

    B, C, H, W = 2, 4, 16, 16
    pred = jax.random.normal(k1, (B, C, H, W, 2), dtype=jnp.float32)
    ref = jax.random.normal(k2, (B, C, H, W, 2), dtype=jnp.float32)
    # Binary sampling mask over k-space, broadcastable to pred.
    mask = (jax.random.uniform(k3, (1, 1, H, W, 1)) > 0.5).astype(jnp.float32)

    # Deterministic parameter init (matches torch.ones(1)).
    dc_weight = jnp.ones((1,), dtype=jnp.float32)

    out = data_consistency_layer(pred, ref, mask, dc_weight)
    out = jax.block_until_ready(out)

    expected = _reference(pred, ref, mask, dc_weight)
    assert out.shape == pred.shape
    assert jnp.allclose(out, expected, atol=1e-6), "mismatch vs reference"

    print("KERNEL_OK")
</pallas_src>

<mosaic_0001>
module attributes {stable_mosaic.version = 11 : i64} {
  func.func @_dc_kernel(%arg0: i32, %arg1: i32, %arg2: memref<1x1xf32, #tpu.memory_space<smem>>, %arg3: memref<8x512xf32, #tpu.memory_space<vmem>>, %arg4: memref<8x512xf32, #tpu.memory_space<vmem>>, %arg5: memref<1x512xf32, #tpu.memory_space<vmem>>, %arg6: memref<8x512xf32, #tpu.memory_space<vmem>>) attributes {dimension_semantics = [#tpu.dimension_semantics<parallel>, #tpu.dimension_semantics<parallel>], iteration_bounds = array<i64: 1, 1>, scalar_prefetch = 0 : i64, scratch_operands = 0 : i64, tpu.core_type = #tpu.core_type<tc>, window_params = [{transform_indices = @transform_0, window_bounds = array<i64: 1, 1>}, {transform_indices = @transform_1, window_bounds = array<i64: 8, 512>}, {transform_indices = @transform_2, window_bounds = array<i64: 8, 512>}, {transform_indices = @transform_3, window_bounds = array<i64: 1, 512>}, {transform_indices = @transform_4, window_bounds = array<i64: 8, 512>}]} {
    %c0 = arith.constant 0 : index
    %c0_0 = arith.constant 0 : index
    %0 = memref.load %arg2[%c0, %c0_0] : memref<1x1xf32, #tpu.memory_space<smem>>
    %c0_1 = arith.constant 0 : index
    %c0_2 = arith.constant 0 : index
    %1 = vector.load %arg3[%c0_1, %c0_2] : memref<8x512xf32, #tpu.memory_space<vmem>>, vector<8x512xf32>
    %c0_3 = arith.constant 0 : index
    %c0_4 = arith.constant 0 : index
    %2 = vector.load %arg4[%c0_3, %c0_4] : memref<8x512xf32, #tpu.memory_space<vmem>>, vector<8x512xf32>
    %3 = arith.subf %1, %2 : vector<8x512xf32>
    %c0_5 = arith.constant 0 : index
    %c0_6 = arith.constant 0 : index
    %4 = vector.load %arg5[%c0_5, %c0_6] : memref<1x512xf32, #tpu.memory_space<vmem>>, vector<1x512xf32>
    %cst = arith.constant 0.000000e+00 : f32
    %5 = vector.broadcast %cst : f32 to vector<1x512xf32>
    %6 = arith.cmpf one, %4, %5 : vector<1x512xf32>
    %cst_7 = arith.constant 0.000000e+00 : f32
    %7 = vector.broadcast %cst_7 : f32 to vector<8x512xf32>
    %8 = vector.shape_cast %6 : vector<1x512xi1> to vector<1x512xi1>
    %9 = vector.broadcast %8 : vector<1x512xi1> to vector<8x512xi1>
    %10 = arith.select %9, %3, %7 : vector<8x512xi1>, vector<8x512xf32>
    %11 = vector.broadcast %0 : f32 to vector<8x512xf32>
    %12 = arith.mulf %10, %11 : vector<8x512xf32>
    %c0_8 = arith.constant 0 : index
    %c0_9 = arith.constant 0 : index
    %13 = vector.load %arg6[%c0_8, %c0_9] : memref<8x512xf32, #tpu.memory_space<vmem>>, vector<8x512xf32>
    tpu.vector_store %arg6[%c0_8, %c0_9], %12 {strides = array<i32>} : memref<8x512xf32, #tpu.memory_space<vmem>>, vector<8x512xf32>,
    return
  }
  func.func @transform_0(%arg0: i32, %arg1: i32) -> (i32, i32) {
    %c0_i32 = arith.constant 0 : i32
    %c0_i32_0 = arith.constant 0 : i32
    %c0_i32_1 = arith.constant 0 : i32
    return %c0_i32, %c0_i32_0 : i32, i32
  }
  func.func @transform_1(%arg0: i32, %arg1: i32) -> (i32, i32) {
    %c0_i32 = arith.constant 0 : i32
    return %arg0, %arg1 : i32, i32
  }
  func.func @transform_2(%arg0: i32, %arg1: i32) -> (i32, i32) {
    %c0_i32 = arith.constant 0 : i32
    return %arg0, %arg1 : i32, i32
  }
  func.func @transform_3(%arg0: i32, %arg1: i32) -> (i32, i32) {
    %c0_i32 = arith.constant 0 : i32
    %c0_i32_0 = arith.constant 0 : i32
    return %c0_i32, %arg1 : i32, i32
  }
  func.func @transform_4(%arg0: i32, %arg1: i32) -> (i32, i32) {
    %c0_i32 = arith.constant 0 : i32
    return %arg0, %arg1 : i32, i32
  }
}

</mosaic_0001>

<llo_original>
// kernel: tpu_custom_call.1
$region0: #{tpu_custom_call.1}
  #allocation0 [shape = 'u32[]', space=smem, size = 0x4, offset = 0x4, fixed_abs, tag = 'smem constant byte address 0x4 - core index']
  #allocation1 [shape = 'u32[144,128]{1,0:T(1,128)}', space=vmem, size = 0x12000, scoped, tag = 'internal scratch']
  #allocation2 [shape = 'f32[1,1]{1,0:T(1,128)S(6)}', space=smem, size = 0x200, scoped, tag = 'scoped memory for tpu_custom_call.1']
  %s0 = inlined_call_operand.<no memory space> [shape: f32[1,1], index: 0, kind: input, shape index: {}]
  %s1 = inlined_call_operand.hbm [shape: f32[8,512], index: 1, kind: input, shape index: {}]
  %s2 = inlined_call_operand.hbm [shape: f32[8,512], index: 2, kind: input, shape index: {}]
  %s3 = inlined_call_operand.vmem [shape: f32[1,512], index: 3, kind: input, shape index: {}]
  %s4 = inlined_call_operand.hbm [shape: f32[8,512], index: 4, kind: output, shape index: {}]
  %s5 = sld [smem:[#allocation0]]
  $region34: #{tpu_custom_call.1} parent=0
    _
  %s7 = ssub.s32 1, %s5
  %s8 = scalar_select 0, %s7, %s5
  %9 = sst [smem:[#allocation2]] %s0
  $region1: #{tpu_custom_call.1} parent=0
    #allocation3 [shape = 'u8[16384]{0}', space=vmem, size = 0x4000, scoped, tag = 'input window, operand 1, single buffered']
    #allocation4 [shape = 's32[1]{0}', space=sflag, size = 0x4, scoped, tag = 'scoped memory for tpu_custom_call.1']
    #allocation5 [shape = 's32[1]{0}', space=sflag, size = 0x4, scoped, tag = 'scoped memory for tpu_custom_call.1']
    #allocation6 [shape = 'u8[16384]{0}', space=vmem, size = 0x4000, scoped, tag = 'input window, operand 2, single buffered']
    #allocation7 [shape = 's32[1]{0}', space=sflag, size = 0x4, scoped, tag = 'scoped memory for tpu_custom_call.1']
    #allocation8 [shape = 'u8[16384]{0}', space=vmem, size = 0x4000, scoped, tag = 'output window, operand 0, single buffered']
    %10 = vsyncpa [#allocation4], 0
    %11 = vsyncpa [#allocation7], 0
    %12 = vsyncpa [#allocation5], 0
    // Predicated region
    $region2: #{tpu_custom_call.1} parent=1 // pred_check
      _
    $region3: #{tpu_custom_call.1} parent=1 // pred_check_branch
      %14 = sbr.rel (0) target = $region5
    $region4: #{tpu_custom_call.1} parent=1 // pred_region
      _
    $region5: #{tpu_custom_call.1} parent=1 // pred_fallthru
      _
    // Predicated region
    $region6: #{tpu_custom_call.1} parent=1 // pred_check
      _
    $region7: #{tpu_custom_call.1} parent=1 // pred_check_branch
      %16 = sbr.rel (0) target = $region9
    $region8: #{tpu_custom_call.1} parent=1 // pred_region
      %s18 = ssub.s32 512, 512
      %19 = vsyncadd [#allocation4], %s18
      %s21 = sshll.u32 [#allocation3], 4
      %s22 = int_to_ptr.vmem [resolvable:$true] %s21
      %24 = dma.hbm_to_vmem [thread:$0]  %s1, 512, %s22, [#allocation4]
    $region9: #{tpu_custom_call.1} parent=1 // pred_fallthru
      _
    // Predicated region
    $region10: #{tpu_custom_call.1} parent=1 // pred_check
      _
    $region11: #{tpu_custom_call.1} parent=1 // pred_check_branch
      %26 = sbr.rel (0) target = $region13
    $region12: #{tpu_custom_call.1} parent=1 // pred_region
      %s28 = ssub.s32 512, 512
      %29 = vsyncadd [#allocation7], %s28
      %s31 = sshll.u32 [#allocation6], 4
      %s32 = int_to_ptr.vmem [resolvable:$true] %s31
      %34 = dma.hbm_to_vmem [thread:$0]  %s2, 512, %s32, [#allocation7]
    $region13: #{tpu_custom_call.1} parent=1 // pred_fallthru
      _
    // Predicated region
    $region14: #{tpu_custom_call.1} parent=1 // pred_check
      _
    $region15: #{tpu_custom_call.1} parent=1 // pred_check_branch
      %36 = sbr.rel (0) target = $region17
    $region16: #{tpu_custom_call.1} parent=1 // pred_region
      _
    $region17: #{tpu_custom_call.1} parent=1 // pred_fallthru
      _
    // Predicated region
    $region18: #{tpu_custom_call.1} parent=1 // pred_check
      _
    $region19: #{tpu_custom_call.1} parent=1 // pred_check_branch
      %38 = sbr.rel (0) target = $region21
    $region20: #{tpu_custom_call.1} parent=1 // pred_region
      %39 = dma.done [#allocation4], 512
    $region21: #{tpu_custom_call.1} parent=1 // pred_fallthru
      _
    // Predicated region
    $region22: #{tpu_custom_call.1} parent=1 // pred_check
      _
    $region23: #{tpu_custom_call.1} parent=1 // pred_check_branch
      %41 = sbr.rel (0) target = $region25
    $region24: #{tpu_custom_call.1} parent=1 // pred_region
      %42 = dma.done [#allocation7], 512
    $region25: #{tpu_custom_call.1} parent=1 // pred_fallthru
      _
    %s43 = sld [smem:[#allocation2]]
    %v44 = vld [vmem:[#allocation3] sm:$0xff]
    %v45 = vld [vmem:[#allocation3 + $0x8] sm:$0xff]
    %v46 = vld [vmem:[#allocation3 + $0x10] sm:$0xff]
    %v47 = vld [vmem:[#allocation3 + $0x18] sm:$0xff]
    %v48 = vld [vmem:[#allocation6] sm:$0xff]
    %v49 = vld [vmem:[#allocation6 + $0x8] sm:$0xff]
    %v50 = vld [vmem:[#allocation6 + $0x10] sm:$0xff]
    %v51 = vld [vmem:[#allocation6 + $0x18] sm:$0xff]
    %v52 = vsub.f32 %v44, %v48
    %v53 = vsub.f32 %v45, %v49
    %v54 = vsub.f32 %v46, %v50
    %v55 = vsub.f32 %v47, %v51
    %v56 = vld [vmem:[%s3] sm:$0xf]
    %vm57 = vcmp.ne.f32.partialorder %v56, 0.0
    %v58 = vsel %vm57, 1, 0
    %v59 = vlaneseq
    %v60 = vshrl.u32 %v59, 7
    %v61 = vsub.s32 0, %v60
    %v62 = vrot.slane %v58, %v61
    %v63 = vlaneseq
    %v64 = vshrl.u32 %v63, 7
    %v65 = vsub.s32 1, %v64
    %v66 = vrot.slane %v58, %v65
    %v67 = vlaneseq
    %v68 = vshrl.u32 %v67, 7
    %v69 = vsub.s32 2, %v68
    %v70 = vrot.slane %v58, %v69
    %v71 = vlaneseq
    %v72 = vshrl.u32 %v71, 7
    %v73 = vsub.s32 3, %v72
    %v74 = vrot.slane %v58, %v73
    %vm75 = vcmp.eq.s32.totalorder %v62, 1
    %vm76 = vcmp.eq.s32.totalorder %v66, 1
    %vm77 = vcmp.eq.s32.totalorder %v70, 1
    %vm78 = vcmp.eq.s32.totalorder %v74, 1
    %v79 = vsel %vm75, %v52, 0.0
    %v80 = vsel %vm76, %v53, 0.0
    %v81 = vsel %vm77, %v54, 0.0
    %v82 = vsel %vm78, %v55, 0.0
    %v83 = vstv %s43
    %v84 = vmul.f32 %v79, %v83
    %v85 = vmul.f32 %v80, %v83
    %v86 = vmul.f32 %v81, %v83
    %v87 = vmul.f32 %v82, %v83
    %88 = vst [vmem:[#allocation8] sm:$0xff] %v84
    %89 = vst [vmem:[#allocation8 + $0x8] sm:$0xff] %v85
    %90 = vst [vmem:[#allocation8 + $0x10] sm:$0xff] %v86
    %91 = vst [vmem:[#allocation8 + $0x18] sm:$0xff] %v87
    // Predicated region
    $region26: #{tpu_custom_call.1} parent=1 // pred_check
      _
    $region27: #{tpu_custom_call.1} parent=1 // pred_check_branch
      %93 = sbr.rel (0) target = $region29
    $region28: #{tpu_custom_call.1} parent=1 // pred_region
      %s95 = ssub.s32 512, 512
      %96 = vsyncadd [#allocation5], %s95
      %s98 = sshll.u32 [#allocation8], 4
      %s99 = int_to_ptr.vmem [resolvable:$true] %s98
      %101 = dma.vmem_to_hbm [thread:$0]  %s99, 512, %s4, [#allocation5]
    $region29: #{tpu_custom_call.1} parent=1 // pred_fallthru
      _
    // Predicated region
    $region30: #{tpu_custom_call.1} parent=1 // pred_check
      _
    $region31: #{tpu_custom_call.1} parent=1 // pred_check_branch
      %103 = sbr.rel (0) target = $region33
    $region32: #{tpu_custom_call.1} parent=1 // pred_region
      %104 = dma.done [#allocation5], 512
    $region33: #{tpu_custom_call.1} parent=1 // pred_fallthru
      _
    %105 = vsyncpa [#allocation4], 1
    %106 = vsyncpa [#allocation7], 1
    %107 = vsyncpa [#allocation5], 1

</llo_original>
